<compile_context>
chip_gen: v5e
topology: v5e:2x2
jax: 0.10.0
libtpu: 0.0.40
codegen_flags: <defaults>
</compile_context>

<pallas_src>
import functools

import jax
import jax.numpy as jnp
from jax.experimental import pallas as pl
from jax.experimental.pallas import tpu as pltpu


def _mlp_layer_kernel(x_ref, w_ref, b_ref, gamma_ref, beta_ref, o_ref, *, eps):
    # Linear on the MXU in the native input dtype; accumulate in f32.
    y = jnp.dot(x_ref[...], w_ref[...], preferred_element_type=jnp.float32)
    y = y + b_ref[...].astype(jnp.float32)

    # LayerNorm (biased variance, PyTorch semantics) in f32 with gamma folded
    # into the inv-std scale: (y - mean) * (gamma * rsqrt(var + eps)) + beta.
    mean = jnp.mean(y, axis=-1, keepdims=True)
    centered = y - mean
    var = jnp.mean(centered * centered, axis=-1, keepdims=True)
    scale = gamma_ref[...].astype(jnp.float32) * jax.lax.rsqrt(var + eps)
    y_hat = centered * scale + beta_ref[...].astype(jnp.float32)

    # SiLU: x * sigmoid(x)  (sigmoid runs on the EUP).
    o_ref[...] = (y_hat * jax.nn.sigmoid(y_hat)).astype(o_ref.dtype)


def mlp_layer(x, weight_t, bias, gamma, beta, *, eps=1e-5, tile_m=512,
              vmem_limit_bytes=None):
    """Fused Linear + LayerNorm + SiLU (PyTorch MLPLayer forward).

    Args:
      x:        (..., in_features)                   bf16 or f32
      weight_t: (in_features, out_features)          transposed nn.Linear weight
      bias:     (out_features,)
      gamma:    (out_features,)  LayerNorm weight
      beta:     (out_features,)  LayerNorm bias
    Returns:
      (..., out_features) in x.dtype.
    """
    orig_shape = x.shape
    in_f = orig_shape[-1]
    in_f_w, out_f = weight_t.shape
    if in_f != in_f_w:
        raise ValueError("weight_t must be (in_features, out_features)")

    x2 = x.reshape(-1, in_f)
    n = x2.shape[0]
    dtype = x.dtype
    x_bytes = jnp.dtype(dtype).itemsize
    w_bytes = jnp.dtype(weight_t.dtype).itemsize
    w_vmem = in_f * out_f * w_bytes

    budget = 48 * 1024 * 1024  # keep headroom even on v7x (64 MiB VMEM / TC)
    if w_vmem > budget:
        # TODO(synk): tile the contraction (K) dim with a grid reduction axis
        # if the weight ever exceeds the VMEM budget (not the case for ALIGNN
        # MLP sizes).
        raise ValueError("Linear weight does not fit in the VMEM budget")

    def _est(tm):
        return (w_vmem
                + 2 * tm * in_f * x_bytes      # x tile, double-buffered
                + 2 * tm * out_f * x_bytes     # out tile, double-buffered
                + 4 * tm * out_f * 4           # f32 intermediates
                + 8 * out_f * 4)               # bias / gamma / beta

    # Row tile: multiple of 8 sublanes, shrunk until the working set fits.
    tm = max(8, (int(tile_m) // 8) * 8)
    while tm > 8 and _est(tm) > budget:
        tm = max(8, (tm // 2 // 8) * 8)
    if n <= tm:
        tm = n                      # single block; full extent needs no 8-align
    grid_m = pl.cdiv(n, tm)

    if vmem_limit_bytes is None:
        vmem_limit_bytes = int(min(64 * 1024 * 1024,
                                   max(32 * 1024 * 1024, 2 * _est(tm))))

    b2 = bias.reshape(1, out_f)
    g2 = gamma.reshape(1, out_f)
    be2 = beta.reshape(1, out_f)

    kernel = functools.partial(_mlp_layer_kernel, eps=eps)
    const_map = lambda i: (0, 0)

    out = pl.pallas_call(
        kernel,
        out_shape=jax.ShapeDtypeStruct((n, out_f), dtype),
        grid_spec=pltpu.PrefetchScalarGridSpec(
            num_scalar_prefetch=0,
            grid=(grid_m,),
            in_specs=[
                pl.BlockSpec((tm, in_f), lambda i: (i, 0)),   # x row tile
                pl.BlockSpec((in_f, out_f), const_map,
                             pipeline_mode=pl.Buffered(1)),   # weight (resident)
                pl.BlockSpec((1, out_f), const_map,
                             pipeline_mode=pl.Buffered(1)),   # bias
                pl.BlockSpec((1, out_f), const_map,
                             pipeline_mode=pl.Buffered(1)),   # LN gamma
                pl.BlockSpec((1, out_f), const_map,
                             pipeline_mode=pl.Buffered(1)),   # LN beta
            ],
            out_specs=pl.BlockSpec((tm, out_f), lambda i: (i, 0)),
        ),
        compiler_params=pltpu.CompilerParams(
            dimension_semantics=("parallel",),
            vmem_limit_bytes=vmem_limit_bytes,
        ),
    )(x2, weight_t, b2, g2, be2)

    return out.reshape(orig_shape[:-1] + (out_f,))


if __name__ == "__main__":
    # Small shapes consistent with MLPLayer(in_features=32, out_features=32)
    # applied to a batch of node/edge feature rows.
    N, IN_F, OUT_F = 16, 32, 32

    key = jax.random.PRNGKey(0)
    kx, kw, kb, kg, kbe, kx2, kx3 = jax.random.split(key, 7)

    limit = 1.0 / jnp.sqrt(jnp.float32(IN_F))
    weight_t = jax.random.uniform(kw, (IN_F, OUT_F), jnp.float32, -limit, limit)
    bias = jax.random.uniform(kb, (OUT_F,), jnp.float32, -limit, limit)
    gamma = jnp.ones((OUT_F,), jnp.float32) + 0.01 * jax.random.normal(kg, (OUT_F,))
    beta = 0.01 * jax.random.normal(kbe, (OUT_F,), dtype=jnp.float32)

    def ref_fn(x, w, b, g, be, eps=1e-5):
        y = x.astype(jnp.float32) @ w.astype(jnp.float32) + b
        mu = jnp.mean(y, axis=-1, keepdims=True)
        var = jnp.mean((y - mu) ** 2, axis=-1, keepdims=True)
        y = (y - mu) / jnp.sqrt(var + eps) * g + be
        return y * jax.nn.sigmoid(y)

    # Case 1: f32 inputs.
    x1 = jax.random.normal(kx, (N, IN_F), dtype=jnp.float32)
    o1 = jax.block_until_ready(mlp_layer(x1, weight_t, bias, gamma, beta))
    r1 = ref_fn(x1, weight_t, bias, gamma, beta)
    assert o1.shape == (N, OUT_F)
    assert jnp.allclose(o1, r1, atol=1e-4, rtol=1e-4), "f32 mismatch vs reference"

    # Case 2: ragged N (multi-step grid with a partial last block).
    N2 = 40
    x2 = jax.random.normal(kx2, (N2, IN_F), dtype=jnp.float32)
    o2 = jax.block_until_ready(mlp_layer(x2, weight_t, bias, gamma, beta, tile_m=16))
    r2 = ref_fn(x2, weight_t, bias, gamma, beta)
    assert o2.shape == (N2, OUT_F)
    assert jnp.allclose(o2, r2, atol=1e-4, rtol=1e-4), "ragged-N mismatch vs reference"

    # Case 3: bf16 activations/weights fed natively to the MXU (f32 accum inside).
    xb = x1.astype(jnp.bfloat16)
    wb = weight_t.astype(jnp.bfloat16)
    ob = jax.block_until_ready(mlp_layer(xb, wb, bias, gamma, beta))
    rb = ref_fn(xb, wb, bias, gamma, beta)
    assert ob.shape == (N, OUT_F)
    assert jnp.allclose(ob.astype(jnp.float32), rb, atol=1e-1, rtol=1e-1), "bf16 mismatch"

    # Case 4: leading batch dims, e.g. (graphs, nodes, features).
    x3 = jax.random.normal(kx3, (2, 8, IN_F), dtype=jnp.float32)
    o3 = jax.block_until_ready(mlp_layer(x3, weight_t, bias, gamma, beta))
    r3 = ref_fn(x3, weight_t, bias, gamma, beta)
    assert o3.shape == (2, 8, OUT_F)
    assert jnp.allclose(o3, r3, atol=1e-4, rtol=1e-4), "leading-dims mismatch"

    print("KERNEL_OK")
</pallas_src>

<mosaic_0001>
module attributes {stable_mosaic.version = 11 : i64} {
  func.func @_mlp_layer_kernel(%arg0: i32, %arg1: memref<16x32xf32, #tpu.memory_space<vmem>>, %arg2: memref<32x32xf32, #tpu.memory_space<vmem>>, %arg3: memref<1x32xf32, #tpu.memory_space<vmem>>, %arg4: memref<1x32xf32, #tpu.memory_space<vmem>>, %arg5: memref<1x32xf32, #tpu.memory_space<vmem>>, %arg6: memref<16x32xf32, #tpu.memory_space<vmem>>) attributes {dimension_semantics = [#tpu.dimension_semantics<parallel>], iteration_bounds = array<i64: 1>, scalar_prefetch = 0 : i64, scratch_operands = 0 : i64, tpu.core_type = #tpu.core_type<tc>, window_params = [{transform_indices = @transform_0, window_bounds = array<i64: 16, 32>}, {pipeline_mode = #tpu.pipeline_mode<synchronous>, transform_indices = @transform_1, window_bounds = array<i64: 32, 32>}, {pipeline_mode = #tpu.pipeline_mode<synchronous>, transform_indices = @transform_2, window_bounds = array<i64: 1, 32>}, {pipeline_mode = #tpu.pipeline_mode<synchronous>, transform_indices = @transform_3, window_bounds = array<i64: 1, 32>}, {pipeline_mode = #tpu.pipeline_mode<synchronous>, transform_indices = @transform_4, window_bounds = array<i64: 1, 32>}, {transform_indices = @transform_5, window_bounds = array<i64: 16, 32>}]} {
    %c0 = arith.constant 0 : index
    %c0_0 = arith.constant 0 : index
    %0 = vector.load %arg1[%c0, %c0_0] : memref<16x32xf32, #tpu.memory_space<vmem>>, vector<16x32xf32>
    %c0_1 = arith.constant 0 : index
    %c0_2 = arith.constant 0 : index
    %1 = vector.load %arg2[%c0_1, %c0_2] : memref<32x32xf32, #tpu.memory_space<vmem>>, vector<32x32xf32>
    %cst = arith.constant dense<0.000000e+00> : vector<16x32xf32>
    %2 = tpu.matmul %0, %1, %cst {dimension_numbers = #tpu.dot_dimension_numbers<[1], [0], [0], [1], [0, 0, 1, 1], [], []>} : vector<16x32xf32>, vector<32x32xf32>, vector<16x32xf32> -> vector<16x32xf32>
    %c0_3 = arith.constant 0 : index
    %c0_4 = arith.constant 0 : index
    %3 = vector.load %arg3[%c0_3, %c0_4] : memref<1x32xf32, #tpu.memory_space<vmem>>, vector<1x32xf32>
    %4 = vector.broadcast %3 : vector<1x32xf32> to vector<16x32xf32>
    %5 = arith.addf %2, %4 : vector<16x32xf32>
    %cst_5 = arith.constant dense<0.000000e+00> : vector<16xf32>
    %6 = vector.multi_reduction <add>, %5, %cst_5 [1] : vector<16x32xf32> to vector<16xf32>
    %7 = vector.shape_cast %6 : vector<16xf32> to vector<16x1xf32>
    %cst_6 = arith.constant 3.200000e+01 : f32
    %8 = vector.broadcast %cst_6 : f32 to vector<16x1xf32>
    %9 = arith.divf %7, %8 : vector<16x1xf32>
    %10 = vector.broadcast %9 : vector<16x1xf32> to vector<16x32xf32>
    %11 = arith.subf %5, %10 : vector<16x32xf32>
    %12 = arith.mulf %11, %11 : vector<16x32xf32>
    %cst_7 = arith.constant dense<0.000000e+00> : vector<16xf32>
    %13 = vector.multi_reduction <add>, %12, %cst_7 [1] : vector<16x32xf32> to vector<16xf32>
    %14 = vector.shape_cast %13 : vector<16xf32> to vector<16x1xf32>
    %cst_8 = arith.constant 3.200000e+01 : f32
    %15 = vector.broadcast %cst_8 : f32 to vector<16x1xf32>
    %16 = arith.divf %14, %15 : vector<16x1xf32>
    %c0_9 = arith.constant 0 : index
    %c0_10 = arith.constant 0 : index
    %17 = vector.load %arg4[%c0_9, %c0_10] : memref<1x32xf32, #tpu.memory_space<vmem>>, vector<1x32xf32>
    %cst_11 = arith.constant 9.99999974E-6 : f32
    %18 = vector.broadcast %cst_11 : f32 to vector<16x1xf32>
    %19 = arith.addf %16, %18 : vector<16x1xf32>
    %20 = math.rsqrt %19 : vector<16x1xf32>
    %21 = vector.broadcast %17 : vector<1x32xf32> to vector<16x32xf32>
    %22 = vector.broadcast %20 : vector<16x1xf32> to vector<16x32xf32>
    %23 = arith.mulf %21, %22 : vector<16x32xf32>
    %24 = arith.mulf %11, %23 : vector<16x32xf32>
    %c0_12 = arith.constant 0 : index
    %c0_13 = arith.constant 0 : index
    %25 = vector.load %arg5[%c0_12, %c0_13] : memref<1x32xf32, #tpu.memory_space<vmem>>, vector<1x32xf32>
    %26 = vector.broadcast %25 : vector<1x32xf32> to vector<16x32xf32>
    %27 = arith.addf %24, %26 : vector<16x32xf32>
    %28 = arith.negf %27 : vector<16x32xf32>
    %29 = math.exp %28 : vector<16x32xf32>
    %cst_14 = arith.constant 1.000000e+00 : f32
    %30 = vector.broadcast %cst_14 : f32 to vector<16x32xf32>
    %31 = arith.addf %30, %29 : vector<16x32xf32>
    %32 = arith.divf %30, %31 : vector<16x32xf32>
    %33 = arith.mulf %27, %32 : vector<16x32xf32>
    %c0_15 = arith.constant 0 : index
    %c0_16 = arith.constant 0 : index
    %34 = vector.load %arg6[%c0_15, %c0_16] : memref<16x32xf32, #tpu.memory_space<vmem>>, vector<16x32xf32>
    tpu.vector_store %arg6[%c0_15, %c0_16], %33 {strides = array<i32>} : memref<16x32xf32, #tpu.memory_space<vmem>>, vector<16x32xf32>,
    return
  }
  func.func @transform_0(%arg0: i32) -> (i32, i32) {
    %c0_i32 = arith.constant 0 : i32
    %c0_i32_0 = arith.constant 0 : i32
    return %arg0, %c0_i32 : i32, i32
  }
  func.func @transform_1(%arg0: i32) -> (i32, i32) {
    %c0_i32 = arith.constant 0 : i32
    %c0_i32_0 = arith.constant 0 : i32
    %c0_i32_1 = arith.constant 0 : i32
    return %c0_i32, %c0_i32_0 : i32, i32
  }
  func.func @transform_2(%arg0: i32) -> (i32, i32) {
    %c0_i32 = arith.constant 0 : i32
    %c0_i32_0 = arith.constant 0 : i32
    %c0_i32_1 = arith.constant 0 : i32
    return %c0_i32, %c0_i32_0 : i32, i32
  }
  func.func @transform_3(%arg0: i32) -> (i32, i32) {
    %c0_i32 = arith.constant 0 : i32
    %c0_i32_0 = arith.constant 0 : i32
    %c0_i32_1 = arith.constant 0 : i32
    return %c0_i32, %c0_i32_0 : i32, i32
  }
  func.func @transform_4(%arg0: i32) -> (i32, i32) {
    %c0_i32 = arith.constant 0 : i32
    %c0_i32_0 = arith.constant 0 : i32
    %c0_i32_1 = arith.constant 0 : i32
    return %c0_i32, %c0_i32_0 : i32, i32
  }
  func.func @transform_5(%arg0: i32) -> (i32, i32) {
    %c0_i32 = arith.constant 0 : i32
    %c0_i32_0 = arith.constant 0 : i32
    return %arg0, %c0_i32 : i32, i32
  }
}

</mosaic_0001>

<llo_original>
// kernel: tpu_custom_call.1
$region0: #{tpu_custom_call.1}
  #allocation0 [shape = 'u32[]', space=smem, size = 0x4, offset = 0x4, fixed_abs, tag = 'smem constant byte address 0x4 - core index']
  #allocation1 [shape = 'u32[72,128]{1,0:T(1,128)}', space=vmem, size = 0x9000, scoped, tag = 'internal scratch']
  %s0 = inlined_call_operand.hbm [shape: f32[16,32], index: 0, kind: input, shape index: {}]
  %s1 = inlined_call_operand.hbm [shape: f32[32,32], index: 1, kind: input, shape index: {}]
  %s2 = inlined_call_operand.vmem [shape: f32[1,32], index: 2, kind: input, shape index: {}]
  %s3 = inlined_call_operand.vmem [shape: f32[1,32], index: 3, kind: input, shape index: {}]
  %s4 = inlined_call_operand.vmem [shape: f32[1,32], index: 4, kind: input, shape index: {}]
  %s5 = inlined_call_operand.hbm [shape: f32[16,32], index: 5, kind: output, shape index: {}]
  %s6 = sld [smem:[#allocation0]]
  $region38: #{tpu_custom_call.1} parent=0
    _
  %s8 = ssub.s32 1, %s6
  %s9 = scalar_select 0, %s8, %s6
  $region1: #{tpu_custom_call.1} parent=0
    #allocation2 [shape = 'u8[8192]{0}', space=vmem, size = 0x2000, scoped, tag = 'input window, operand 0, single buffered']
    #allocation3 [shape = 's32[1]{0}', space=sflag, size = 0x4, scoped, tag = 'scoped memory for tpu_custom_call.1']
    #allocation4 [shape = 's32[1]{0}', space=sflag, size = 0x4, scoped, tag = 'scoped memory for tpu_custom_call.1']
    #allocation5 [shape = 'u8[16384]{0}', space=vmem, size = 0x4000, scoped, tag = 'input window, operand 1, single buffered']
    #allocation6 [shape = 's32[1]{0}', space=sflag, size = 0x4, scoped, tag = 'scoped memory for tpu_custom_call.1']
    #allocation7 [shape = 'u8[8192]{0}', space=vmem, size = 0x2000, scoped, tag = 'output window, operand 0, single buffered']
    %10 = vsyncpa [#allocation3], 0
    %11 = vsyncpa [#allocation6], 0
    %12 = vsyncpa [#allocation4], 0
    // Predicated region
    $region2: #{tpu_custom_call.1} parent=1 // pred_check
      _
    $region3: #{tpu_custom_call.1} parent=1 // pred_check_branch
      %14 = sbr.rel (0) target = $region5
    $region4: #{tpu_custom_call.1} parent=1 // pred_region
      %16 = vsyncadd [#allocation3], 0
      %s17 = sshll.u32 %s0, 4
      %s18 = int_to_ptr.hbm [resolvable:$true] %s17
      %s19 = sshll.u32 [#allocation2], 4
      %s20 = int_to_ptr.vmem [resolvable:$true] %s19
      %25 = dma.hbm_to_vmem [thread:$0]  %s18, 256, %s20, [#allocation3], 128, 128, 8
    $region5: #{tpu_custom_call.1} parent=1 // pred_fallthru
      _
    // Predicated region
    $region6: #{tpu_custom_call.1} parent=1 // pred_check
      _
    $region7: #{tpu_custom_call.1} parent=1 // pred_check_branch
      %27 = sbr.rel (0) target = $region9
    $region8: #{tpu_custom_call.1} parent=1 // pred_region
      %29 = vsyncadd [#allocation6], 0
      %s30 = sshll.u32 %s1, 4
      %s31 = int_to_ptr.hbm [resolvable:$true] %s30
      %s32 = sshll.u32 [#allocation5], 4
      %s33 = int_to_ptr.vmem [resolvable:$true] %s32
      %38 = dma.hbm_to_vmem [thread:$0]  %s31, 512, %s33, [#allocation6], 128, 128, 8
    $region9: #{tpu_custom_call.1} parent=1 // pred_fallthru
      _
    // Predicated region
    $region10: #{tpu_custom_call.1} parent=1 // pred_check
      _
    $region11: #{tpu_custom_call.1} parent=1 // pred_check_branch
      %40 = sbr.rel (0) target = $region13
    $region12: #{tpu_custom_call.1} parent=1 // pred_region
      _
    $region13: #{tpu_custom_call.1} parent=1 // pred_fallthru
      _
    // Predicated region
    $region14: #{tpu_custom_call.1} parent=1 // pred_check
      _
    $region15: #{tpu_custom_call.1} parent=1 // pred_check_branch
      %42 = sbr.rel (0) target = $region17
    $region16: #{tpu_custom_call.1} parent=1 // pred_region
      _
    $region17: #{tpu_custom_call.1} parent=1 // pred_fallthru
      _
    // Predicated region
    $region18: #{tpu_custom_call.1} parent=1 // pred_check
      _
    $region19: #{tpu_custom_call.1} parent=1 // pred_check_branch
      %44 = sbr.rel (0) target = $region21
    $region20: #{tpu_custom_call.1} parent=1 // pred_region
      _
    $region21: #{tpu_custom_call.1} parent=1 // pred_fallthru
      _
    // Predicated region
    $region22: #{tpu_custom_call.1} parent=1 // pred_check
      _
    $region23: #{tpu_custom_call.1} parent=1 // pred_check_branch
      %46 = sbr.rel (0) target = $region25
    $region24: #{tpu_custom_call.1} parent=1 // pred_region
      %48 = dma.done [#allocation3], 256
    $region25: #{tpu_custom_call.1} parent=1 // pred_fallthru
      _
    // Predicated region
    $region26: #{tpu_custom_call.1} parent=1 // pred_check
      _
    $region27: #{tpu_custom_call.1} parent=1 // pred_check_branch
      %50 = sbr.rel (0) target = $region29
    $region28: #{tpu_custom_call.1} parent=1 // pred_region
      %52 = dma.done [#allocation6], 512
    $region29: #{tpu_custom_call.1} parent=1 // pred_fallthru
      _
    %v53 = vld [vmem:[#allocation2] sm:$0xff]
    %v54 = vld [vmem:[#allocation2 + $0x8] sm:$0xff]
    %v55 = vld [vmem:[#allocation5] sm:$0xff]
    %v56 = vld [vmem:[#allocation5 + $0x8] sm:$0xff]
    %v57 = vld [vmem:[#allocation5 + $0x10] sm:$0xff]
    %v58 = vld [vmem:[#allocation5 + $0x18] sm:$0xff]
    %v59 = vld [vmem:[%s2] sm:$0x1]
    %v61 = vperm.slane %v59, 0
    %vm63 = vcmask 261120
    %v65 = vsel %vm63, %v53, 0
    %v68 = vsel %vm63, %v54, 0
    %70 = vmatpush.msra.mxu0 0.0
    %71 = vmatpush.msra.mxu0 0.0
    %72 = vmatpush.msra.mxu0 0.0
    %73 = vmatpush.msra.mxu0 0.0
    %74 = vmatpush.msra.mxu0 0.0
    %75 = vmatpush.msra.mxu0 0.0
    %76 = vmatpush.msra.mxu0 0.0
    %77 = vmatpush.msra.mxu0 0.0
    %78 = vmatpush.msra.mxu0 0.0
    %79 = vmatpush.msra.mxu0 0.0
    %80 = vmatpush.msra.mxu0 0.0
    %81 = vmatpush.msra.mxu0 0.0
    %82 = vmatpush.msra.mxu0 %v58
    %83 = vmatpush.msra.mxu0 %v57
    %84 = vmatpush.msra.mxu0 %v56
    %85 = vmatpush.msra.mxu0 %v55
    %86 = vmatmul.f32.gmra.mxu0 %v65
    %v87 = vpop.f32.mrf.mxu0
    %v88 = vadd.f32 %v61, %v87
    %89 = vmatmul.f32.gmra.mxu0 %v68
    %v90 = vpop.f32.mrf.mxu0
    %v91 = vadd.f32 %v61, %v90
    %92 = vdwg.mxu0
    %v93 = vsel %vm63, %v88, 0.0
    %94 = vadd.xlane.f32.xlu0 %v93
    %v95 = vpop.xlane.xlu0 %94
    %v96 = vsel %vm63, %v91, 0.0
    %97 = vadd.xlane.f32.xlu0 %v96
    %v98 = vpop.xlane.xlu0 %97
    %v99 = vrcp.pop 32.0
    %v100 = vmul.f32 32.0, %v99
    %v101 = vsub.f32 1.0, %v100
    %v102 = vmul.f32 %v99, %v101
    %v103 = vadd.f32 %v99, %v102
    %vm104 = vweird.f32 %v99
    %v105 = vsel %vm104, %v99, %v103
    %v106 = vmul.f32 %v95, %v105
    %v107 = vmul.f32 %v98, %v105
    %v108 = vsub.f32 %v88, %v106
    %v109 = vsub.f32 %v91, %v107
    %v110 = vmul.f32 %v108, %v108
    %v111 = vmul.f32 %v109, %v109
    %v112 = vsel %vm63, %v110, 0.0
    %113 = vadd.xlane.f32.xlu0 %v112
    %v114 = vpop.xlane.xlu0 %113
    %v115 = vsel %vm63, %v111, 0.0
    %116 = vadd.xlane.f32.xlu0 %v115
    %v117 = vpop.xlane.xlu0 %116
    %v118 = vmul.f32 %v114, %v105
    %v119 = vmul.f32 %v117, %v105
    %v120 = vld [vmem:[%s3] sm:$0x1]
    %v121 = vadd.f32 %v118, 1e-05
    %v122 = vadd.f32 %v119, 1e-05
    %v123 = vrsqrt.pop %v121
    %v124 = vmul.f32 %v123, %v121
    %v125 = vmul.f32 %v124, %v123
    %v126 = vmul.f32 0.5, %v125
    %v127 = vsub.f32 1.5, %v126
    %v128 = vmul.f32 %v123, %v127
    %vm129 = vweird.f32 %v121
    %vm130 = vweird.f32 %v123
    %vm131 = vmor %vm129, %vm130
    %v132 = vsel %vm131, %v123, %v128
    %v133 = vrsqrt.pop %v122
    %v134 = vmul.f32 %v133, %v122
    %v135 = vmul.f32 %v134, %v133
    %v136 = vmul.f32 0.5, %v135
    %v137 = vsub.f32 1.5, %v136
    %v138 = vmul.f32 %v133, %v137
    %vm139 = vweird.f32 %v122
    %vm140 = vweird.f32 %v133
    %vm141 = vmor %vm139, %vm140
    %v142 = vsel %vm141, %v133, %v138
    %v144 = vperm.slane %v120, 0
    %v146 = vmul.f32 %v144, %v132
    %v147 = vmul.f32 %v144, %v142
    %v148 = vmul.f32 %v108, %v146
    %v149 = vmul.f32 %v109, %v147
    %v150 = vld [vmem:[%s4] sm:$0x1]
    %v152 = vperm.slane %v150, 0
    %v154 = vadd.f32 %v148, %v152
    %v155 = vadd.f32 %v149, %v152
    %v156 = vxor.u32 %v154, 2147483648
    %v157 = vxor.u32 %v155, 2147483648
    %v158 = vmul.f32 %v156, 1.442695
    %v159 = vpow.pop %v158
    %v160 = vmul.f32 %v157, 1.442695
    %v161 = vpow.pop %v160
    %v162 = vadd.f32 %v159, 1.0
    %v163 = vadd.f32 %v161, 1.0
    %v164 = vrcp.pop %v162
    %v165 = vmul.f32 %v162, %v164
    %v166 = vsub.f32 1.0, %v165
    %v167 = vmul.f32 %v164, %v166
    %v168 = vadd.f32 %v164, %v167
    %vm169 = vweird.f32 %v162
    %vm170 = vweird.f32 %v164
    %vm171 = vmor %vm169, %vm170
    %v172 = vsel %vm171, %v164, %v168
    %v173 = vand.u32 2147483647, %v162
    %vm174 = vcmp.eq.f32.partialorder %v173, 8.507059e+37
    %v175 = vand.u32 %v162, 2147483648
    %v176 = vor.u32 1.1754944e-38, %v175
    %v177 = vsel %vm174, %v176, %v172
    %v178 = vmul.f32 1.0, %v177
    %v179 = vrcp.pop %v163
    %v180 = vmul.f32 %v163, %v179
    %v181 = vsub.f32 1.0, %v180
    %v182 = vmul.f32 %v179, %v181
    %v183 = vadd.f32 %v179, %v182
    %vm184 = vweird.f32 %v163
    %vm185 = vweird.f32 %v179
    %vm186 = vmor %vm184, %vm185
    %v187 = vsel %vm186, %v179, %v183
    %v188 = vand.u32 2147483647, %v163
    %vm189 = vcmp.eq.f32.partialorder %v188, 8.507059e+37
    %v190 = vand.u32 %v163, 2147483648
    %v191 = vor.u32 1.1754944e-38, %v190
    %v192 = vsel %vm189, %v191, %v187
    %v193 = vmul.f32 1.0, %v192
    %v194 = vmul.f32 %v154, %v178
    %v195 = vmul.f32 %v155, %v193
    %196 = vst.msk [vmem:[#allocation7] sm:$0xff] %vm63, %v194
    %197 = vst.msk [vmem:[#allocation7 + $0x8] sm:$0xff] %vm63, %v195
    // Predicated region
    $region30: #{tpu_custom_call.1} parent=1 // pred_check
      _
    $region31: #{tpu_custom_call.1} parent=1 // pred_check_branch
      %199 = sbr.rel (0) target = $region33
    $region32: #{tpu_custom_call.1} parent=1 // pred_region
      %201 = vsyncadd [#allocation4], 0
      %s202 = sshll.u32 [#allocation7], 4
      %s203 = int_to_ptr.vmem [resolvable:$true] %s202
      %s204 = sshll.u32 %s5, 4
      %s205 = int_to_ptr.hbm [resolvable:$true] %s204
      %210 = dma.vmem_to_hbm [thread:$0]  %s203, 256, %s205, [#allocation4], 128, 128, 8
    $region33: #{tpu_custom_call.1} parent=1 // pred_fallthru
      _
    // Predicated region
    $region34: #{tpu_custom_call.1} parent=1 // pred_check
      _
    $region35: #{tpu_custom_call.1} parent=1 // pred_check_branch
      %212 = sbr.rel (0) target = $region37
    $region36: #{tpu_custom_call.1} parent=1 // pred_region
      %214 = dma.done [#allocation4], 256
    $region37: #{tpu_custom_call.1} parent=1 // pred_fallthru
      _
    %215 = vsyncpa [#allocation3], 1
    %216 = vsyncpa [#allocation6], 1
    %217 = vsyncpa [#allocation4], 1

</llo_original>
